<compile_context>
chip_gen: v5e
topology: v5e:2x2
jax: 0.10.0
libtpu: 0.0.40
codegen_flags: <defaults>
</compile_context>

<pallas_src>
import numpy as np
import jax
import jax.numpy as jnp
from jax.experimental import pallas as pl
from jax.experimental.pallas import tpu as pltpu

LANE = 128
SUBLANE = 8
MAX_BLOCK_ROWS = 512        # (512, 128) f32 = 256 KiB per buffer


def _memory_kernel(params_ref, t_ref, o_ref):
    # params_ref: SMEM f32[3] = [mu, inv_norm, neg_half_inv_var]
    mu = params_ref[0]
    inv_norm = params_ref[1]
    neg_half_inv_var = params_ref[2]
    z = t_ref[...] - mu
    o_ref[...] = inv_norm * jnp.exp(neg_half_inv_var * (z * z))


def _round_up(x, m):
    return ((x + m - 1) // m) * m


def memory_forward(t, mu, sigma):
    """Elementwise Gaussian PDF of t (any shape/dtype), via a Pallas TPU kernel."""
    orig_shape = t.shape
    orig_dtype = t.dtype

    t_flat = t.reshape(-1).astype(jnp.float32)
    n = t_flat.shape[0]

    # Choose a lane-dense [rows, 128] slab and a block size:
    #  - small inputs: one full-slab block (grid of 1, minimal launch overhead)
    #  - large inputs: (512, 128) blocks, grid >= 2 so both v7x TCs get work
    rows_needed = int(pl.cdiv(n, LANE))
    if rows_needed <= MAX_BLOCK_ROWS:
        block_rows = int(_round_up(max(rows_needed, SUBLANE), SUBLANE))
        rows = block_rows
    else:
        block_rows = MAX_BLOCK_ROWS
        rows = int(_round_up(rows_needed, block_rows))

    padded_n = rows * LANE
    if padded_n != n:
        t_flat = jnp.pad(t_flat, (0, padded_n - n))
    t2d = t_flat.reshape(rows, LANE)

    # Hoist scalar math out of the vector path; pack into one SMEM array.
    mu_f = jnp.asarray(mu, jnp.float32)
    sigma_f = jnp.asarray(sigma, jnp.float32)
    inv_norm = 1.0 / (sigma_f * jnp.sqrt(jnp.float32(2.0 * np.pi)))
    neg_half_inv_var = -0.5 / (sigma_f * sigma_f)
    params = jnp.stack([mu_f, inv_norm, neg_half_inv_var]).astype(jnp.float32)

    grid = (rows // block_rows,)
    out2d = pl.pallas_call(
        _memory_kernel,
        out_shape=jax.ShapeDtypeStruct((rows, LANE), jnp.float32),
        grid_spec=pl.GridSpec(
            grid=grid,
            in_specs=[
                pl.BlockSpec(memory_space=pltpu.MemorySpace.SMEM),      # params
                pl.BlockSpec((block_rows, LANE), lambda i: (i, 0)),     # t tile
            ],
            out_specs=pl.BlockSpec((block_rows, LANE), lambda i: (i, 0)),
        ),
        compiler_params=pltpu.CompilerParams(
            dimension_semantics=("parallel",)),
    )(params, t2d)

    out = out2d.reshape(-1)[:n].reshape(orig_shape)
    return out.astype(orig_dtype)


def init_memory_params(key):
    """Deterministic parameter init mirroring Memory.__init__.

    The nn.Sequential MLP (Linear 1->20->20->20->1 with Tanh/Sigmoid) is
    initialized for completeness (normal std=0.01 weights, zero biases), but
    it is NOT used by Memory.forward, which only touches mu and sigma.
    """
    dims = [(1, 20), (20, 20), (20, 20), (20, 1)]
    params = {"mu": jnp.float32(5.0), "sigma": jnp.float32(1.0), "mlp": []}
    for fan_in, fan_out in dims:
        key, sub = jax.random.split(key)
        w = 0.01 * jax.random.normal(sub, (fan_out, fan_in), jnp.float32)
        b = jnp.zeros((fan_out,), jnp.float32)
        params["mlp"].append((w, b))
    return params


if __name__ == "__main__":
    key = jax.random.PRNGKey(0)
    params = init_memory_params(key)

    # Example input: small NCHW-style tensor of "times".
    key, sub = jax.random.split(key)
    t = jax.random.normal(sub, (2, 4, 16, 16), jnp.float32) * 3.0 + 5.0

    out = memory_forward(t, params["mu"], params["sigma"])
    out = jax.block_until_ready(out)

    # Reference check against pure-JAX formula.
    ref = (1.0 / (params["sigma"] * jnp.sqrt(2.0 * jnp.float32(np.pi)))
           * jnp.exp(-0.5 * (t - params["mu"]) ** 2 / params["sigma"] ** 2))
    np.testing.assert_allclose(np.asarray(out), np.asarray(ref),
                               rtol=1e-5, atol=1e-6)
    assert out.shape == t.shape and out.dtype == jnp.float32

    # Also exercise the padded / multi-block path for coverage.
    key, sub = jax.random.split(key)
    t_big = jax.random.normal(sub, (3, 7, 33, 31), jnp.float32) * 2.0 + 5.0  # numel not % 1024
    out_big = jax.block_until_ready(
        memory_forward(t_big, params["mu"], params["sigma"]))
    ref_big = (1.0 / (params["sigma"] * jnp.sqrt(2.0 * jnp.float32(np.pi)))
               * jnp.exp(-0.5 * (t_big - params["mu"]) ** 2 / params["sigma"] ** 2))
    np.testing.assert_allclose(np.asarray(out_big), np.asarray(ref_big),
                               rtol=1e-5, atol=1e-6)

    print("KERNEL_OK")
</pallas_src>

<mosaic_0001>
module attributes {stable_mosaic.version = 11 : i64} {
  func.func @_memory_kernel(%arg0: i32, %arg1: memref<3xf32, #tpu.memory_space<smem>>, %arg2: memref<16x128xf32, #tpu.memory_space<vmem>>, %arg3: memref<16x128xf32, #tpu.memory_space<vmem>>) attributes {dimension_semantics = [#tpu.dimension_semantics<parallel>], iteration_bounds = array<i64: 1>, scalar_prefetch = 0 : i64, scratch_operands = 0 : i64, tpu.core_type = #tpu.core_type<tc>, window_params = [{transform_indices = @transform_0, window_bounds = array<i64: 3>}, {transform_indices = @transform_1, window_bounds = array<i64: 16, 128>}, {transform_indices = @transform_2, window_bounds = array<i64: 16, 128>}]} {
    %c0 = arith.constant 0 : index
    %0 = memref.load %arg1[%c0] : memref<3xf32, #tpu.memory_space<smem>>
    %c1 = arith.constant 1 : index
    %1 = memref.load %arg1[%c1] : memref<3xf32, #tpu.memory_space<smem>>
    %c2 = arith.constant 2 : index
    %2 = memref.load %arg1[%c2] : memref<3xf32, #tpu.memory_space<smem>>
    %c0_0 = arith.constant 0 : index
    %c0_1 = arith.constant 0 : index
    %3 = vector.load %arg2[%c0_0, %c0_1] : memref<16x128xf32, #tpu.memory_space<vmem>>, vector<16x128xf32>
    %4 = vector.broadcast %0 : f32 to vector<16x128xf32>
    %5 = arith.subf %3, %4 : vector<16x128xf32>
    %6 = arith.mulf %5, %5 : vector<16x128xf32>
    %7 = vector.broadcast %2 : f32 to vector<16x128xf32>
    %8 = arith.mulf %7, %6 : vector<16x128xf32>
    %9 = math.exp %8 : vector<16x128xf32>
    %10 = vector.broadcast %1 : f32 to vector<16x128xf32>
    %11 = arith.mulf %10, %9 : vector<16x128xf32>
    %c0_2 = arith.constant 0 : index
    %c0_3 = arith.constant 0 : index
    %12 = vector.load %arg3[%c0_2, %c0_3] : memref<16x128xf32, #tpu.memory_space<vmem>>, vector<16x128xf32>
    tpu.vector_store %arg3[%c0_2, %c0_3], %11 {strides = array<i32>} : memref<16x128xf32, #tpu.memory_space<vmem>>, vector<16x128xf32>,
    return
  }
  func.func @transform_0(%arg0: i32) -> i32 {
    %c0_i32 = arith.constant 0 : i32
    %c0_i32_0 = arith.constant 0 : i32
    return %c0_i32 : i32
  }
  func.func @transform_1(%arg0: i32) -> (i32, i32) {
    %c0_i32 = arith.constant 0 : i32
    %c0_i32_0 = arith.constant 0 : i32
    return %arg0, %c0_i32 : i32, i32
  }
  func.func @transform_2(%arg0: i32) -> (i32, i32) {
    %c0_i32 = arith.constant 0 : i32
    %c0_i32_0 = arith.constant 0 : i32
    return %arg0, %c0_i32 : i32, i32
  }
}

</mosaic_0001>

<llo_original>
// kernel: tpu_custom_call.1
$region0: #{tpu_custom_call.1}
  #allocation0 [shape = 'u32[]', space=smem, size = 0x4, offset = 0x4, fixed_abs, tag = 'smem constant byte address 0x4 - core index']
  #allocation1 [shape = 'u32[72,128]{1,0:T(1,128)}', space=vmem, size = 0x9000, scoped, tag = 'internal scratch']
  %s0 = inlined_call_operand.hbm [shape: f32[3], index: 0, kind: input, shape index: {}]
  %s1 = inlined_call_operand.hbm [shape: f32[16,128], index: 1, kind: input, shape index: {}]
  %s2 = inlined_call_operand.hbm [shape: f32[16,128], index: 2, kind: output, shape index: {}]
  %s3 = sld [smem:[#allocation0]]
  $region26: #{tpu_custom_call.1} parent=0
    _
  %s5 = ssub.s32 1, %s3
  %s6 = scalar_select 0, %s5, %s3
  $region1: #{tpu_custom_call.1} parent=0
    #allocation2 [shape = 'u8[512]{0}', space=smem, size = 0x200, scoped, tag = 'input window, operand 0, single buffered']
    #allocation3 [shape = 's32[1]{0}', space=sflag, size = 0x4, scoped, tag = 'scoped memory for tpu_custom_call.1']
    #allocation4 [shape = 's32[1]{0}', space=sflag, size = 0x4, scoped, tag = 'scoped memory for tpu_custom_call.1']
    #allocation5 [shape = 's32[1]{0}', space=sflag, size = 0x4, scoped, tag = 'scoped memory for tpu_custom_call.1']
    #allocation6 [shape = 'u8[8192]{0}', space=vmem, size = 0x2000, scoped, tag = 'input window, operand 1, single buffered']
    #allocation7 [shape = 'u8[8192]{0}', space=vmem, size = 0x2000, scoped, tag = 'output window, operand 0, single buffered']
    %7 = vsyncpa [#allocation5], 0
    %8 = vsyncpa [#allocation3], 0
    %9 = vsyncpa [#allocation4], 0
    // Predicated region
    $region2: #{tpu_custom_call.1} parent=1 // pred_check
      _
    $region3: #{tpu_custom_call.1} parent=1 // pred_check_branch
      %11 = sbr.rel (0) target = $region5
    $region4: #{tpu_custom_call.1} parent=1 // pred_region
      %13 = vsyncadd [#allocation5], 0
      %s15 = sshll.u32 %s0, 4
      %s16 = int_to_ptr.hbm [resolvable:$true] %s15
      %18 = dma.hbm_to_smem %s16, 16, [#allocation2], [#allocation5]
    $region5: #{tpu_custom_call.1} parent=1 // pred_fallthru
      _
    // Predicated region
    $region6: #{tpu_custom_call.1} parent=1 // pred_check
      _
    $region7: #{tpu_custom_call.1} parent=1 // pred_check_branch
      %20 = sbr.rel (0) target = $region9
    $region8: #{tpu_custom_call.1} parent=1 // pred_region
      %22 = vsyncadd [#allocation3], 0
      %s23 = sshll.u32 %s1, 4
      %s24 = int_to_ptr.hbm [resolvable:$true] %s23
      %s25 = sshll.u32 [#allocation6], 4
      %s26 = int_to_ptr.vmem [resolvable:$true] %s25
      %31 = dma.hbm_to_vmem [thread:$0]  %s24, 256, %s26, [#allocation3], 128, 128, 8
    $region9: #{tpu_custom_call.1} parent=1 // pred_fallthru
      _
    // Predicated region
    $region10: #{tpu_custom_call.1} parent=1 // pred_check
      _
    $region11: #{tpu_custom_call.1} parent=1 // pred_check_branch
      %33 = sbr.rel (0) target = $region13
    $region12: #{tpu_custom_call.1} parent=1 // pred_region
      %35 = dma.done [#allocation5], 16
    $region13: #{tpu_custom_call.1} parent=1 // pred_fallthru
      _
    // Predicated region
    $region14: #{tpu_custom_call.1} parent=1 // pred_check
      _
    $region15: #{tpu_custom_call.1} parent=1 // pred_check_branch
      %37 = sbr.rel (0) target = $region17
    $region16: #{tpu_custom_call.1} parent=1 // pred_region
      %39 = dma.done [#allocation3], 256
    $region17: #{tpu_custom_call.1} parent=1 // pred_fallthru
      _
    %40 = sfence
    %s41 = sld [smem:[#allocation2]]
    %s42 = sld [smem:[#allocation2 + $0x1]]
    %s43 = sld [smem:[#allocation2 + $0x2]]
    %v44 = vld [vmem:[#allocation6] sm:$0xff]
    %v45 = vld [vmem:[#allocation6 + $0x8] sm:$0xff]
    %v46 = vstv %s41
    %v47 = vsub.f32 %v44, %v46
    %v48 = vsub.f32 %v45, %v46
    %v49 = vmul.f32 %v47, %v47
    %v50 = vmul.f32 %v48, %v48
    %v51 = vstv %s43
    %v52 = vmul.f32 %v51, %v49
    %v53 = vmul.f32 %v51, %v50
    %v54 = vmul.f32 %v52, 1.442695
    %v55 = vpow.pop %v54
    %v56 = vmul.f32 %v53, 1.442695
    %v57 = vpow.pop %v56
    %v58 = vstv %s42
    %v59 = vmul.f32 %v58, %v55
    %v60 = vmul.f32 %v58, %v57
    %61 = vst [vmem:[#allocation7] sm:$0xff] %v59
    %62 = vst [vmem:[#allocation7 + $0x8] sm:$0xff] %v60
    // Predicated region
    $region18: #{tpu_custom_call.1} parent=1 // pred_check
      _
    $region19: #{tpu_custom_call.1} parent=1 // pred_check_branch
      %64 = sbr.rel (0) target = $region21
    $region20: #{tpu_custom_call.1} parent=1 // pred_region
      %66 = vsyncadd [#allocation4], 0
      %s67 = sshll.u32 [#allocation7], 4
      %s68 = int_to_ptr.vmem [resolvable:$true] %s67
      %s69 = sshll.u32 %s2, 4
      %s70 = int_to_ptr.hbm [resolvable:$true] %s69
      %75 = dma.vmem_to_hbm [thread:$0]  %s68, 256, %s70, [#allocation4], 128, 128, 8
    $region21: #{tpu_custom_call.1} parent=1 // pred_fallthru
      _
    // Predicated region
    $region22: #{tpu_custom_call.1} parent=1 // pred_check
      _
    $region23: #{tpu_custom_call.1} parent=1 // pred_check_branch
      %77 = sbr.rel (0) target = $region25
    $region24: #{tpu_custom_call.1} parent=1 // pred_region
      %79 = dma.done [#allocation4], 256
    $region25: #{tpu_custom_call.1} parent=1 // pred_fallthru
      _
    %80 = vsyncpa [#allocation3], 1
    %81 = vsyncpa [#allocation4], 1
    %82 = vsyncpa [#allocation5], 1

</llo_original>
